<compile_context>
chip_gen: v6e
topology: v6e:2x2x1
jax: 0.10.0
libtpu: 0.0.40
codegen_flags: <defaults>
</compile_context>

<pallas_src>
import functools

import jax
import jax.numpy as jnp
from jax.experimental import pallas as pl
from jax.experimental.pallas import tpu as pltpu


def _round_up(x, m):
    return (x + m - 1) // m * m


def _pinn_kernel(n_layers, out_dim, x_ref, w_ref, b_ref, out_ref):
    """x_ref: (P, block_m) transposed batch tile (batch on lanes).
    w_ref: (L, P, P) packed transposed weights.  b_ref: (L, P, 1) packed biases."""
    x = x_ref[...]                                        # (P, block_m), f32
    for l in range(n_layers):                             # static unroll
        w = w_ref[l]                                      # (P, P)
        b = b_ref[l]                                      # (P, 1), broadcasts over lanes
        x = jnp.dot(w, x, preferred_element_type=jnp.float32) + b
        if l < n_layers - 1:                              # Tanh between every pair of Linears
            x = jnp.tanh(x)
    out_ref[...] = x[:out_dim, :].astype(out_ref.dtype)   # lane-dense (out_dim, block_m) store


def pinn_forward(X, lb, ub, weights, biases, *, block_m=512):
    """Pallas forward pass of the PINN MLP.

    X:       (N, in_dim) float32
    lb, ub:  (in_dim,) float32 normalization bounds
    weights: list of (fan_in, fan_out) float32 arrays (transpose of PyTorch [out, in])
    biases:  list of (fan_out,) float32 arrays
    """
    N, in_dim = X.shape
    n_layers = len(weights)
    out_dim = weights[-1].shape[1]

    # ---- fold (X - lb)/(ub - lb) into layer 0:  W0' = W0 * s[:,None], b0' = b0 - (lb*s) @ W0 ----
    scale = 1.0 / (ub.astype(jnp.float32) - lb.astype(jnp.float32))      # (in_dim,)
    w0 = weights[0].astype(jnp.float32) * scale[:, None]
    b0 = biases[0].astype(jnp.float32) - (lb.astype(jnp.float32) * scale) @ weights[0].astype(jnp.float32)
    ws = [w0] + [w.astype(jnp.float32) for w in weights[1:]]
    bs = [b0] + [b.astype(jnp.float32) for b in biases[1:]]

    # ---- pack transposed, zero-padded params into two slabs (single BlockSpec each) ----
    P = _round_up(max(max(w.shape) for w in ws), 8)
    w_slab = jnp.zeros((n_layers, P, P), jnp.float32)
    b_slab = jnp.zeros((n_layers, P, 1), jnp.float32)
    for l, (w, b) in enumerate(zip(ws, bs)):
        fi, fo = w.shape
        w_slab = w_slab.at[l, :fo, :fi].set(w.T)          # stored as (fan_out, fan_in)
        b_slab = b_slab.at[l, :fo, 0].set(b)

    # ---- batch tile: lane-aligned, large, but keep >=2 grid steps when N allows (v7x 2-TC) ----
    bm = min(block_m, _round_up(pl.cdiv(N, 2), 128))
    bm = max(128, bm - bm % 128)
    n_pad = _round_up(N, bm)
    grid = (n_pad // bm,)

    # ---- batch-on-lanes input: X^T zero-padded to (P, n_pad) ----
    xt = jnp.zeros((P, n_pad), jnp.float32).at[:in_dim, :N].set(X.T.astype(jnp.float32))

    kernel = functools.partial(_pinn_kernel, n_layers, out_dim)
    out_t = pl.pallas_call(
        kernel,
        out_shape=jax.ShapeDtypeStruct((out_dim, n_pad), jnp.float32),
        grid_spec=pltpu.PrefetchScalarGridSpec(
            num_scalar_prefetch=0,
            grid=grid,
            in_specs=[
                pl.BlockSpec((P, bm), lambda i: (0, i)),                  # X^T batch tile
                pl.BlockSpec((n_layers, P, P), lambda i: (0, 0, 0)),      # packed weights
                pl.BlockSpec((n_layers, P, 1), lambda i: (0, 0, 0)),      # packed biases
            ],
            out_specs=pl.BlockSpec((out_dim, bm), lambda i: (0, i)),      # lane-dense output
        ),
        compiler_params=pltpu.CompilerParams(
            dimension_semantics=("parallel",)),
    )(xt, w_slab, b_slab)

    return out_t[:, :N].T                                 # (N, out_dim)


def build_pinn_params(layers, key):
    """Mirror of PINN.__init__ layer construction (Xavier-uniform weights, zero biases).

    The module builds: Linear(layers[0],layers[1]); Linear(w,w) for w in layers[2:-2];
    Linear(layers[-2],layers[-1]).  Weights returned as (fan_in, fan_out).
    """
    dims = [(layers[0], layers[1])]
    for width in layers[2:-2]:
        dims.append((width, width))
    dims.append((layers[-2], layers[-1]))

    weights, biases = [], []
    for (fan_in, fan_out) in dims:
        key, wk = jax.random.split(key)
        limit = (6.0 / (fan_in + fan_out)) ** 0.5
        w = jax.random.uniform(wk, (fan_in, fan_out), jnp.float32, -limit, limit)
        b = jnp.zeros((fan_out,), jnp.float32)
        weights.append(w)
        biases.append(b)
    return weights, biases


def pinn_reference(X, lb, ub, weights, biases):
    """Plain-JAX reference matching the PyTorch forward."""
    x = (X - lb) / (ub - lb)
    n = len(weights)
    for i, (w, b) in enumerate(zip(weights, biases)):
        x = x @ w + b
        if i < n - 1:
            x = jnp.tanh(x)
    return x


if __name__ == "__main__":
    key = jax.random.PRNGKey(0)

    layers = [2, 32, 32, 32, 1]          # [in, hidden, hidden, hidden, out]
    N = 1000                             # collocation points (ragged: exercises padding)

    key, xk = jax.random.split(key)
    X = jax.random.uniform(xk, (N, layers[0]), jnp.float32, -1.0, 1.0)
    lb = jnp.array([-1.0, -1.0], dtype=jnp.float32)
    ub = jnp.array([1.0, 1.0], dtype=jnp.float32)

    weights, biases = build_pinn_params(layers, key)

    out = pinn_forward(X, lb, ub, weights, biases, block_m=256)
    out = jax.block_until_ready(out)

    ref = pinn_reference(X, lb, ub, weights, biases)
    assert out.shape == (N, layers[-1])
    assert jnp.allclose(out, ref, atol=2e-5, rtol=2e-5), "mismatch vs reference"

    print("KERNEL_OK")
</pallas_src>

<mosaic_0001>
module attributes {stable_mosaic.version = 11 : i64} {
  func.func @_pinn_kernel(%arg0: i32, %arg1: memref<32x256xf32, #tpu.memory_space<vmem>>, %arg2: memref<3x32x32xf32, #tpu.memory_space<vmem>>, %arg3: memref<3x32x1xf32, #tpu.memory_space<vmem>>, %arg4: memref<1x256xf32, #tpu.memory_space<vmem>>) attributes {dimension_semantics = [#tpu.dimension_semantics<parallel>], iteration_bounds = array<i64: 4>, scalar_prefetch = 0 : i64, scratch_operands = 0 : i64, tpu.core_type = #tpu.core_type<tc>, window_params = [{transform_indices = @transform_0, window_bounds = array<i64: 32, 256>}, {pipeline_mode = #tpu.pipeline_mode<synchronous>, transform_indices = @transform_1, window_bounds = array<i64: 3, 32, 32>}, {pipeline_mode = #tpu.pipeline_mode<synchronous>, transform_indices = @transform_2, window_bounds = array<i64: 3, 32, 1>}, {transform_indices = @transform_3, window_bounds = array<i64: 1, 256>}]} {
    %c0 = arith.constant 0 : index
    %c0_0 = arith.constant 0 : index
    %0 = vector.load %arg1[%c0, %c0_0] : memref<32x256xf32, #tpu.memory_space<vmem>>, vector<32x256xf32>
    %c0_1 = arith.constant 0 : index
    %c0_2 = arith.constant 0 : index
    %c0_3 = arith.constant 0 : index
    %1 = vector.load %arg2[%c0_1, %c0_2, %c0_3] : memref<3x32x32xf32, #tpu.memory_space<vmem>>, vector<1x32x32xf32>
    %2 = vector.shape_cast %1 : vector<1x32x32xf32> to vector<32x32xf32>
    %c0_4 = arith.constant 0 : index
    %c0_5 = arith.constant 0 : index
    %c0_6 = arith.constant 0 : index
    %3 = vector.load %arg3[%c0_4, %c0_5, %c0_6] : memref<3x32x1xf32, #tpu.memory_space<vmem>>, vector<1x32x1xf32>
    %4 = vector.shape_cast %3 : vector<1x32x1xf32> to vector<32x1xf32>
    %cst = arith.constant dense<0.000000e+00> : vector<32x256xf32>
    %5 = tpu.matmul %2, %0, %cst {dimension_numbers = #tpu.dot_dimension_numbers<[1], [0], [0], [1], [0, 0, 1, 1], [], []>} : vector<32x32xf32>, vector<32x256xf32>, vector<32x256xf32> -> vector<32x256xf32>
    %6 = vector.broadcast %4 : vector<32x1xf32> to vector<32x256xf32>
    %7 = arith.addf %5, %6 : vector<32x256xf32>
    %8 = math.tanh %7 : vector<32x256xf32>
    %c1 = arith.constant 1 : index
    %c0_7 = arith.constant 0 : index
    %c0_8 = arith.constant 0 : index
    %9 = vector.load %arg2[%c1, %c0_7, %c0_8] : memref<3x32x32xf32, #tpu.memory_space<vmem>>, vector<1x32x32xf32>
    %10 = vector.shape_cast %9 : vector<1x32x32xf32> to vector<32x32xf32>
    %c1_9 = arith.constant 1 : index
    %c0_10 = arith.constant 0 : index
    %c0_11 = arith.constant 0 : index
    %11 = vector.load %arg3[%c1_9, %c0_10, %c0_11] : memref<3x32x1xf32, #tpu.memory_space<vmem>>, vector<1x32x1xf32>
    %12 = vector.shape_cast %11 : vector<1x32x1xf32> to vector<32x1xf32>
    %cst_12 = arith.constant dense<0.000000e+00> : vector<32x256xf32>
    %13 = tpu.matmul %10, %8, %cst_12 {dimension_numbers = #tpu.dot_dimension_numbers<[1], [0], [0], [1], [0, 0, 1, 1], [], []>} : vector<32x32xf32>, vector<32x256xf32>, vector<32x256xf32> -> vector<32x256xf32>
    %14 = vector.broadcast %12 : vector<32x1xf32> to vector<32x256xf32>
    %15 = arith.addf %13, %14 : vector<32x256xf32>
    %16 = math.tanh %15 : vector<32x256xf32>
    %c2 = arith.constant 2 : index
    %c0_13 = arith.constant 0 : index
    %c0_14 = arith.constant 0 : index
    %17 = vector.load %arg2[%c2, %c0_13, %c0_14] : memref<3x32x32xf32, #tpu.memory_space<vmem>>, vector<1x32x32xf32>
    %18 = vector.shape_cast %17 : vector<1x32x32xf32> to vector<32x32xf32>
    %c2_15 = arith.constant 2 : index
    %c0_16 = arith.constant 0 : index
    %c0_17 = arith.constant 0 : index
    %19 = vector.load %arg3[%c2_15, %c0_16, %c0_17] : memref<3x32x1xf32, #tpu.memory_space<vmem>>, vector<1x32x1xf32>
    %20 = vector.shape_cast %19 : vector<1x32x1xf32> to vector<32x1xf32>
    %cst_18 = arith.constant dense<0.000000e+00> : vector<32x256xf32>
    %21 = tpu.matmul %18, %16, %cst_18 {dimension_numbers = #tpu.dot_dimension_numbers<[1], [0], [0], [1], [0, 0, 1, 1], [], []>} : vector<32x32xf32>, vector<32x256xf32>, vector<32x256xf32> -> vector<32x256xf32>
    %22 = vector.broadcast %20 : vector<32x1xf32> to vector<32x256xf32>
    %23 = arith.addf %21, %22 : vector<32x256xf32>
    %24 = vector.extract_strided_slice %23 {offsets = [0, 0], sizes = [1, 256], strides = [1, 1]} : vector<32x256xf32> to vector<1x256xf32>
    %c0_19 = arith.constant 0 : index
    %c0_20 = arith.constant 0 : index
    %25 = vector.load %arg4[%c0_19, %c0_20] : memref<1x256xf32, #tpu.memory_space<vmem>>, vector<1x256xf32>
    tpu.vector_store %arg4[%c0_19, %c0_20], %24 {strides = array<i32>} : memref<1x256xf32, #tpu.memory_space<vmem>>, vector<1x256xf32>,
    return
  }
  func.func @transform_0(%arg0: i32) -> (i32, i32) {
    %c0_i32 = arith.constant 0 : i32
    %c0_i32_0 = arith.constant 0 : i32
    return %c0_i32, %arg0 : i32, i32
  }
  func.func @transform_1(%arg0: i32) -> (i32, i32, i32) {
    %c0_i32 = arith.constant 0 : i32
    %c0_i32_0 = arith.constant 0 : i32
    %c0_i32_1 = arith.constant 0 : i32
    %c0_i32_2 = arith.constant 0 : i32
    return %c0_i32, %c0_i32_0, %c0_i32_1 : i32, i32, i32
  }
  func.func @transform_2(%arg0: i32) -> (i32, i32, i32) {
    %c0_i32 = arith.constant 0 : i32
    %c0_i32_0 = arith.constant 0 : i32
    %c0_i32_1 = arith.constant 0 : i32
    %c0_i32_2 = arith.constant 0 : i32
    return %c0_i32, %c0_i32_0, %c0_i32_1 : i32, i32, i32
  }
  func.func @transform_3(%arg0: i32) -> (i32, i32) {
    %c0_i32 = arith.constant 0 : i32
    %c0_i32_0 = arith.constant 0 : i32
    return %c0_i32, %arg0 : i32, i32
  }
}

</mosaic_0001>

<llo_original>
// kernel: tpu_custom_call.1
$region0: #{tpu_custom_call.1}
  #allocation0 [shape = 'u32[]', space=smem, size = 0x4, offset = 0x4, fixed_abs, tag = 'smem constant byte address 0x4 - core index']
  #allocation1 [shape = 'u32[144,128]{1,0:T(1,128)}', space=vmem, size = 0x12000, scoped, tag = 'internal scratch']
  %s0 = inlined_call_operand.hbm [shape: f32[32,1024], index: 0, kind: input, shape index: {}]
  %s1 = inlined_call_operand.vmem [shape: f32[3,32,32], index: 1, kind: input, shape index: {}]
  %s2 = inlined_call_operand.vmem [shape: f32[3,32,1], index: 2, kind: input, shape index: {}]
  %s3 = inlined_call_operand.hbm [shape: f32[1,1024], index: 3, kind: output, shape index: {}]
  %s4 = sld [smem:[#allocation0]]
  $region49: #{tpu_custom_call.1} parent=0
    _
  %s6 = ssub.s32 1, %s4
  %s7 = scalar_select 0, %s6, %s4
  $region1: #{tpu_custom_call.1} parent=0
    #allocation2 [shape = 'u8[65536]{0}', space=vmem, size = 0x10000, scoped, tag = 'input window, operand 0']
    #allocation3 [shape = 's32[2]{0}', space=sflag, size = 0x8, scoped, tag = 'scoped memory for tpu_custom_call.1']
    #allocation4 [shape = 's32[2]{0}', space=sflag, size = 0x8, scoped, tag = 'scoped memory for tpu_custom_call.1']
    #allocation5 [shape = 'u8[2048]{0}', space=vmem, size = 0x800, scoped, tag = 'output window, operand 0']
    %8 = vsyncpa [#allocation3], 0
    %s9 = scalar_lea.sflag [#allocation3], 1
    %10 = vsyncpa %s9, 0
    %11 = vsyncpa [#allocation4], 0
    %s12 = scalar_lea.sflag [#allocation4], 1
    %13 = vsyncpa %s12, 0
    loop: start=0, step=1, limit=6
    $region2: #{tpu_custom_call.1} parent=1 // loop_pre_header
      _
    $region3: #{tpu_custom_call.1} parent=1 // loop_header
      %s15 = sphi 0, %s19
      %p16 = scmp.ge.s32.totalorder %s15, 6
      %s25 = sphi 0, %s27
      %s28 = sphi 0, %s25
      %s29 = sphi 0, %s28
      %s45 = sphi 0, %s29
      %s49 = sphi 0, %s49
      %s51 = sphi 0, %s49
      %s52 = sphi 0, %s51
      %s66 = sphi 0, %s52
      %s70 = sphi 0, %s70
      %s72 = sphi 0, %s70
      %s73 = sphi 0, %s72
      %s87 = sphi 0, %s73
      %s93 = sphi 0, %s95
      %s96 = sphi 0, %s93
      %s97 = sphi 0, %s96
      %s113 = sphi 0, %s97
    $region4: #{tpu_custom_call.1} parent=1 // loop_header_branch
      %18 = sbr.rel (%p16) target = $region8
    $region5: #{tpu_custom_call.1} parent=1 // loop_body
      %s20 = ssub.s32 %s15, 1
      %s21 = ssub.s32 %s15, 2
      %s22 = sadd.s32 %s15, 1
      %s23 = ssub.s32 %s15, %s22
      %p24 = scmp.eq.s32.totalorder %s23, 0
      %s26 = sadd.s32 %s25, 1
      %s27 = scalar_select %p24, %s25, %s26
      %p30 = pneg %p24
      %p31 = scmp.eq.s32.totalorder %s15, 3
      %p32 = por %p30, %p31
      %p33 = scmp.ne.s32.totalorder %s25, %s28
      %p34 = scmp.eq.s32.totalorder %s15, 0
      %p35 = por %p33, %p34
      %p36 = scmp.ne.s32.totalorder %s25, %s28
      %p37 = scmp.eq.s32.totalorder %s20, 3
      %p38 = por %p36, %p37
      %p39 = scmp.ne.s32.totalorder %s28, %s29
      %p40 = scmp.eq.s32.totalorder %s20, 0
      %p41 = por %p39, %p40
      %p42 = scmp.ne.s32.totalorder %s28, %s29
      %p43 = scmp.eq.s32.totalorder %s21, 3
      %p44 = por %p42, %p43
      %p46 = scmp.ne.s32.totalorder %s29, %s45
      %p47 = scmp.eq.s32.totalorder %s21, 0
      %p48 = por %p46, %p47
      %s50 = sadd.s32 %s49, 1
      %p53 = scmp.eq.s32.totalorder %s15, 3
      %p54 = scmp.ne.s32.totalorder %s49, %s51
      %p55 = scmp.eq.s32.totalorder %s15, 0
      %p56 = por %p54, %p55
      %p57 = scmp.ne.s32.totalorder %s49, %s51
      %p58 = scmp.eq.s32.totalorder %s20, 3
      %p59 = por %p57, %p58
      %p60 = scmp.ne.s32.totalorder %s51, %s52
      %p61 = scmp.eq.s32.totalorder %s20, 0
      %p62 = por %p60, %p61
      %p63 = scmp.ne.s32.totalorder %s51, %s52
      %p64 = scmp.eq.s32.totalorder %s21, 3
      %p65 = por %p63, %p64
      %p67 = scmp.ne.s32.totalorder %s52, %s66
      %p68 = scmp.eq.s32.totalorder %s21, 0
      %p69 = por %p67, %p68
      %s71 = sadd.s32 %s70, 1
      %p74 = scmp.eq.s32.totalorder %s15, 3
      %p75 = scmp.ne.s32.totalorder %s70, %s72
      %p76 = scmp.eq.s32.totalorder %s15, 0
      %p77 = por %p75, %p76
      %p78 = scmp.ne.s32.totalorder %s70, %s72
      %p79 = scmp.eq.s32.totalorder %s20, 3
      %p80 = por %p78, %p79
      %p81 = scmp.ne.s32.totalorder %s72, %s73
      %p82 = scmp.eq.s32.totalorder %s20, 0
      %p83 = por %p81, %p82
      %p84 = scmp.ne.s32.totalorder %s72, %s73
      %p85 = scmp.eq.s32.totalorder %s21, 3
      %p86 = por %p84, %p85
      %p88 = scmp.ne.s32.totalorder %s73, %s87
      %p89 = scmp.eq.s32.totalorder %s21, 0
      %p90 = por %p88, %p89
      %s91 = ssub.s32 %s15, %s22
      %p92 = scmp.eq.s32.totalorder %s91, 0
      %s94 = sadd.s32 %s93, 1
      %s95 = scalar_select %p92, %s93, %s94
      %p98 = pneg %p92
      %p99 = scmp.eq.s32.totalorder %s15, 3
      %p100 = por %p98, %p99
      %p101 = scmp.ne.s32.totalorder %s93, %s96
      %p102 = scmp.eq.s32.totalorder %s15, 0
      %p103 = por %p101, %p102
      %p104 = scmp.ne.s32.totalorder %s93, %s96
      %p105 = scmp.eq.s32.totalorder %s20, 3
      %p106 = por %p104, %p105
      %p107 = scmp.ne.s32.totalorder %s96, %s97
      %p108 = scmp.eq.s32.totalorder %s20, 0
      %p109 = por %p107, %p108
      %p110 = scmp.ne.s32.totalorder %s96, %s97
      %p111 = scmp.eq.s32.totalorder %s21, 3
      %p112 = por %p110, %p111
      %p114 = scmp.ne.s32.totalorder %s97, %s113
      %p115 = scmp.eq.s32.totalorder %s21, 0
      %p116 = por %p114, %p115
      %p117 = scmp.le.s32.totalorder 1, %s15
      %p118 = scmp.lt.s32.totalorder %s15, 5
      %p119 = pnand %p117, %p118
      %p120 = pneg %p119
      // Predicated region
      $region9: #{tpu_custom_call.1} parent=5 // pred_check
        _
      $region10: #{tpu_custom_call.1} parent=5 // pred_check_branch
        %122 = sbr.rel (%p119) target = $region12
      $region11: #{tpu_custom_call.1} parent=5 // pred_region
        %s123 = ssub.s32 %s15, 1
        // Predicated region
        $region13: #{tpu_custom_call.1} parent=11 // pred_check
          %p124 = pneg %p62
        $region14: #{tpu_custom_call.1} parent=11 // pred_check_branch
          %126 = sbr.rel (%p124) target = $region16
        $region15: #{tpu_custom_call.1} parent=11 // pred_region
          _
        $region16: #{tpu_custom_call.1} parent=11 // pred_fallthru
          _
        // Predicated region
        $region17: #{tpu_custom_call.1} parent=11 // pred_check
          %p127 = pneg %p83
        $region18: #{tpu_custom_call.1} parent=11 // pred_check_branch
          %129 = sbr.rel (%p127) target = $region20
        $region19: #{tpu_custom_call.1} parent=11 // pred_region
          _
        $region20: #{tpu_custom_call.1} parent=11 // pred_fallthru
          _
      $region12: #{tpu_custom_call.1} parent=5 // pred_fallthru
        _
      %p130 = scmp.lt.s32.totalorder %s15, 4
      // Predicated region
      $region21: #{tpu_custom_call.1} parent=5 // pred_check
        %p131 = pneg %p130
      $region22: #{tpu_custom_call.1} parent=5 // pred_check_branch
        %133 = sbr.rel (%p131) target = $region24
      $region23: #{tpu_custom_call.1} parent=5 // pred_region
        // Predicated region
        $region25: #{tpu_custom_call.1} parent=23 // pred_check
          %p134 = pneg %p35
        $region26: #{tpu_custom_call.1} parent=23 // pred_check_branch
          %136 = sbr.rel (%p134) target = $region28
        $region27: #{tpu_custom_call.1} parent=23 // pred_region
          %s137 = sand.u32 %s25, 1
          %s138 = scalar_lea.sflag [#allocation3], %s137
          %s139 = sand.u32 %s25, 1
          %s140 = smul.addr %s139, 64
          %s141 = scalar_lea.vmem [#allocation2], %s140
          %s142 = smul.u32 2, %s15
          %s144 = ssub.s32 1024, 1024
          %145 = vsyncadd %s138, %s144
          %s146 = smul.addr %s142, 128
          %s147 = scalar_lea.hbm %s0, %s146
          %s148 = sshll.u32 %s141, 4
          %s149 = int_to_ptr.vmem [resolvable:$true] %s148
          %154 = dma.hbm_to_vmem [thread:$0]  %s147, 1024, %s149, %s138, 1024, 256, 16
        $region28: #{tpu_custom_call.1} parent=23 // pred_fallthru
          _
      $region24: #{tpu_custom_call.1} parent=5 // pred_fallthru
        _
      %p155 = scmp.le.s32.totalorder 1, %s15
      %p156 = scmp.lt.s32.totalorder %s15, 5
      %p157 = pnand %p155, %p156
      %p158 = pneg %p157
      // Predicated region
      $region29: #{tpu_custom_call.1} parent=5 // pred_check
        _
      $region30: #{tpu_custom_call.1} parent=5 // pred_check_branch
        %160 = sbr.rel (%p157) target = $region32
      $region31: #{tpu_custom_call.1} parent=5 // pred_region
        %s161 = ssub.s32 %s15, 1
        %s162 = sand.u32 %s28, 1
        %s163 = scalar_lea.sflag [#allocation3], %s162
        %s164 = sand.u32 %s28, 1
        %s165 = smul.addr %s164, 64
        %s166 = scalar_lea.vmem [#allocation2], %s165
        // Predicated region
        $region33: #{tpu_custom_call.1} parent=31 // pred_check
          %p167 = pneg %p41
        $region34: #{tpu_custom_call.1} parent=31 // pred_check_branch
          %169 = sbr.rel (%p167) target = $region36
        $region35: #{tpu_custom_call.1} parent=31 // pred_region
          %170 = dma.done %s163, 1024
        $region36: #{tpu_custom_call.1} parent=31 // pred_fallthru
          _
        %s171 = sand.u32 %s28, 1
        %s172 = scalar_lea.sflag [#allocation3], %s171
        %s173 = sand.u32 %s28, 1
        %s174 = smul.addr %s173, 64
        %s175 = scalar_lea.vmem [#allocation2], %s174
        %p176 = pneg %p41
        %p177 = pneg %p38
        %p178 = pneg %p62
        %p179 = pneg %p59
        %p180 = pneg %p83
        %p181 = pneg %p80
        %p182 = pneg %p109
        %p183 = pneg %p106
        %s184 = sand.u32 %s96, 1
        %s185 = scalar_lea.sflag [#allocation4], %s184
        %s186 = sand.u32 %s96, 1
        %s187 = smul.addr %s186, 2
        %s188 = scalar_lea.vmem [#allocation5], %s187
        %s189 = smul.u32 2, %s20
        %s190 = smul.u32 2, %s20
        %v191 = vld [vmem:[%s166] sm:$0xff]
        %v192 = vld [vmem:[%s166 + $0x8] sm:$0xff]
        %v193 = vld [vmem:[%s166 + $0x10] sm:$0xff]
        %v194 = vld [vmem:[%s166 + $0x18] sm:$0xff]
        %v195 = vld [vmem:[%s166 + $0x20] sm:$0xff]
        %v196 = vld [vmem:[%s166 + $0x28] sm:$0xff]
        %v197 = vld [vmem:[%s166 + $0x30] sm:$0xff]
        %v198 = vld [vmem:[%s166 + $0x38] sm:$0xff]
        %v199 = vld [vmem:[%s1] sm:$0xff]
        %v200 = vld [vmem:[%s1 + $0x8] sm:$0xff]
        %v201 = vld [vmem:[%s1 + $0x10] sm:$0xff]
        %v202 = vld [vmem:[%s1 + $0x18] sm:$0xff]
        %v203 = vld [vmem:[%s2] sm:$0xff]
        %v204 = vld [vmem:[%s2 + $0x8] sm:$0xff]
        %v205 = vld [vmem:[%s2 + $0x10] sm:$0xff]
        %v206 = vld [vmem:[%s2 + $0x18] sm:$0xff]
        %208 = vset.pattern.permute.xlu0 0
        %209 = vperm.xlu0 %208, %v203
        %v210 = vpop.permute.xlu0 %209
        %213 = vset.pattern.permute.xlu0 0
        %214 = vperm.xlu0 %213, %v204
        %v215 = vpop.permute.xlu0 %214
        %218 = vset.pattern.permute.xlu0 0
        %219 = vperm.xlu0 %218, %v205
        %v220 = vpop.permute.xlu0 %219
        %223 = vset.pattern.permute.xlu0 0
        %224 = vperm.xlu0 %223, %v206
        %v225 = vpop.permute.xlu0 %224
        %vm227 = vcmask 261120
        %v229 = vsel %vm227, %v199, 0
        %v232 = vsel %vm227, %v200, 0
        %v235 = vsel %vm227, %v201, 0
        %v238 = vsel %vm227, %v202, 0
        %240 = vmatprep.subr.mxu0 0.0
        %241 = vmatpush1.msra.mxu0 0.0
        %242 = vmatprep.subr.mxu0 0.0
        %243 = vmatpush1.msra.mxu0 0.0
        %244 = vmatprep.subr.mxu0 0.0
        %245 = vmatpush1.msra.mxu0 0.0
        %246 = vmatprep.subr.mxu0 0.0
        %247 = vmatpush1.msra.mxu0 0.0
        %248 = vmatprep.subr.mxu0 0.0
        %249 = vmatpush1.msra.mxu0 0.0
        %250 = vmatprep.subr.mxu0 0.0
        %251 = vmatpush1.msra.mxu0 0.0
        %252 = vmatprep.subr.mxu0 0.0
        %253 = vmatpush1.msra.mxu0 0.0
        %254 = vmatprep.subr.mxu0 0.0
        %255 = vmatpush1.msra.mxu0 0.0
        %256 = vmatprep.subr.mxu0 0.0
        %257 = vmatpush1.msra.mxu0 0.0
        %258 = vmatprep.subr.mxu0 0.0
        %259 = vmatpush1.msra.mxu0 0.0
        %260 = vmatprep.subr.mxu0 0.0
        %261 = vmatpush1.msra.mxu0 0.0
        %262 = vmatprep.subr.mxu0 0.0
        %263 = vmatpush1.msra.mxu0 0.0
        %264 = vmatprep.subr.mxu0 %v198
        %265 = vmatpush1.msra.mxu0 %v197
        %266 = vmatprep.subr.mxu0 %v196
        %267 = vmatpush1.msra.mxu0 %v195
        %268 = vmatprep.subr.mxu0 %v194
        %269 = vmatpush1.msra.mxu0 %v193
        %270 = vmatprep.subr.mxu0 %v192
        %271 = vmatpush1.msra.mxu0 %v191
        %272 = vmatprep.subr.mxu0 0.0
        %273 = vmatpush2.msra.mxu0 0.0
        %274 = vmatprep.subr.mxu0 0.0
        %275 = vmatpush2.msra.mxu0 0.0
        %276 = vmatprep.subr.mxu0 0.0
        %277 = vmatpush2.msra.mxu0 0.0
        %278 = vmatprep.subr.mxu0 0.0
        %279 = vmatpush2.msra.mxu0 0.0
        %280 = vmatprep.subr.mxu0 0.0
        %281 = vmatpush2.msra.mxu0 0.0
        %282 = vmatprep.subr.mxu0 0.0
        %283 = vmatpush2.msra.mxu0 0.0
        %284 = vmatprep.subr.mxu0 0.0
        %285 = vmatpush2.msra.mxu0 0.0
        %286 = vmatprep.subr.mxu0 0.0
        %287 = vmatpush2.msra.mxu0 0.0
        %288 = vmatprep.subr.mxu0 0.0
        %289 = vmatpush2.msra.mxu0 0.0
        %290 = vmatprep.subr.mxu0 0.0
        %291 = vmatpush2.msra.mxu0 0.0
        %292 = vmatprep.subr.mxu0 0.0
        %293 = vmatpush2.msra.mxu0 0.0
        %294 = vmatprep.subr.mxu0 0.0
        %295 = vmatpush2.msra.mxu0 0.0
        %296 = vmatprep.subr.mxu0 0.0
        %297 = vmatpush2.msra.mxu0 0.0
        %298 = vmatprep.subr.mxu0 0.0
        %299 = vmatpush2.msra.mxu0 0.0
        %300 = vmatprep.subr.mxu0 0.0
        %301 = vmatpush2.msra.mxu0 0.0
        %302 = vmatprep.subr.mxu0 0.0
        %303 = vmatpush2.msra.mxu0 0.0
        %304 = vmatprep.mubr.f32.mxu0 0.0
        %305 = vmatmul.mubr.f32.gmra.mxu0 %v229
        %v306 = vpop.f32.mrf.mxu0
        %v307 = vadd.f32 %v210, %v306
        %v308 = vpop.f32.mrf.mxu0
        %v309 = vadd.f32 %v210, %v308
        %310 = vmatprep.mubr.f32.mxu0 0.0
        %311 = vmatmul.mubr.f32.gmra.mxu0 %v232
        %v312 = vpop.f32.mrf.mxu0
        %v313 = vadd.f32 %v215, %v312
        %v314 = vpop.f32.mrf.mxu0
        %v315 = vadd.f32 %v215, %v314
        %316 = vmatprep.mubr.f32.mxu0 0.0
        %317 = vmatmul.mubr.f32.gmra.mxu0 %v235
        %v318 = vpop.f32.mrf.mxu0
        %v319 = vadd.f32 %v220, %v318
        %v320 = vpop.f32.mrf.mxu0
        %v321 = vadd.f32 %v220, %v320
        %322 = vmatprep.mubr.f32.mxu0 0.0
        %323 = vmatmul.mubr.f32.gmra.mxu0 %v238
        %v324 = vpop.f32.mrf.mxu0
        %v325 = vadd.f32 %v225, %v324
        %v326 = vpop.f32.mrf.mxu0
        %v327 = vadd.f32 %v225, %v326
        %328 = vdwg.mxu0
        %v329 = vtanh.pop %v307
        %v330 = vtanh.pop %v309
        %v331 = vtanh.pop %v313
        %v332 = vtanh.pop %v315
        %v333 = vtanh.pop %v319
        %v334 = vtanh.pop %v321
        %v335 = vtanh.pop %v325
        %v336 = vtanh.pop %v327
        %s337 = scalar_lea.vmem %s1, 32
        %v338 = vld [vmem:[%s337] sm:$0xff]
        %v339 = vld [vmem:[%s337 + $0x8] sm:$0xff]
        %v340 = vld [vmem:[%s337 + $0x10] sm:$0xff]
        %v341 = vld [vmem:[%s337 + $0x18] sm:$0xff]
        %s342 = scalar_lea.vmem %s2, 32
        %v343 = vld [vmem:[%s342] sm:$0xff]
        %v344 = vld [vmem:[%s342 + $0x8] sm:$0xff]
        %v345 = vld [vmem:[%s342 + $0x10] sm:$0xff]
        %v346 = vld [vmem:[%s342 + $0x18] sm:$0xff]
        %348 = vset.pattern.permute.xlu0 0
        %349 = vperm.xlu0 %348, %v343
        %v350 = vpop.permute.xlu0 %349
        %353 = vset.pattern.permute.xlu0 0
        %354 = vperm.xlu0 %353, %v344
        %v355 = vpop.permute.xlu0 %354
        %358 = vset.pattern.permute.xlu0 0
        %359 = vperm.xlu0 %358, %v345
        %v360 = vpop.permute.xlu0 %359
        %363 = vset.pattern.permute.xlu0 0
        %364 = vperm.xlu0 %363, %v346
        %v365 = vpop.permute.xlu0 %364
        %v368 = vsel %vm227, %v338, 0
        %v371 = vsel %vm227, %v339, 0
        %v374 = vsel %vm227, %v340, 0
        %v377 = vsel %vm227, %v341, 0
        %379 = vmatprep.subr.mxu0 0.0
        %380 = vmatpush1.msra.mxu0 0.0
        %381 = vmatprep.subr.mxu0 0.0
        %382 = vmatpush1.msra.mxu0 0.0
        %383 = vmatprep.subr.mxu0 0.0
        %384 = vmatpush1.msra.mxu0 0.0
        %385 = vmatprep.subr.mxu0 0.0
        %386 = vmatpush1.msra.mxu0 0.0
        %387 = vmatprep.subr.mxu0 0.0
        %388 = vmatpush1.msra.mxu0 0.0
        %389 = vmatprep.subr.mxu0 0.0
        %390 = vmatpush1.msra.mxu0 0.0
        %391 = vmatprep.subr.mxu0 0.0
        %392 = vmatpush1.msra.mxu0 0.0
        %393 = vmatprep.subr.mxu0 0.0
        %394 = vmatpush1.msra.mxu0 0.0
        %395 = vmatprep.subr.mxu0 0.0
        %396 = vmatpush1.msra.mxu0 0.0
        %397 = vmatprep.subr.mxu0 0.0
        %398 = vmatpush1.msra.mxu0 0.0
        %399 = vmatprep.subr.mxu0 0.0
        %400 = vmatpush1.msra.mxu0 0.0
        %401 = vmatprep.subr.mxu0 0.0
        %402 = vmatpush1.msra.mxu0 0.0
        %403 = vmatprep.subr.mxu0 %v336
        %404 = vmatpush1.msra.mxu0 %v335
        %405 = vmatprep.subr.mxu0 %v334
        %406 = vmatpush1.msra.mxu0 %v333
        %407 = vmatprep.subr.mxu0 %v332
        %408 = vmatpush1.msra.mxu0 %v331
        %409 = vmatprep.subr.mxu0 %v330
        %410 = vmatpush1.msra.mxu0 %v329
        %411 = vmatprep.subr.mxu0 0.0
        %412 = vmatpush2.msra.mxu0 0.0
        %413 = vmatprep.subr.mxu0 0.0
        %414 = vmatpush2.msra.mxu0 0.0
        %415 = vmatprep.subr.mxu0 0.0
        %416 = vmatpush2.msra.mxu0 0.0
        %417 = vmatprep.subr.mxu0 0.0
        %418 = vmatpush2.msra.mxu0 0.0
        %419 = vmatprep.subr.mxu0 0.0
        %420 = vmatpush2.msra.mxu0 0.0
        %421 = vmatprep.subr.mxu0 0.0
        %422 = vmatpush2.msra.mxu0 0.0
        %423 = vmatprep.subr.mxu0 0.0
        %424 = vmatpush2.msra.mxu0 0.0
        %425 = vmatprep.subr.mxu0 0.0
        %426 = vmatpush2.msra.mxu0 0.0
        %427 = vmatprep.subr.mxu0 0.0
        %428 = vmatpush2.msra.mxu0 0.0
        %429 = vmatprep.subr.mxu0 0.0
        %430 = vmatpush2.msra.mxu0 0.0
        %431 = vmatprep.subr.mxu0 0.0
        %432 = vmatpush2.msra.mxu0 0.0
        %433 = vmatprep.subr.mxu0 0.0
        %434 = vmatpush2.msra.mxu0 0.0
        %435 = vmatprep.subr.mxu0 0.0
        %436 = vmatpush2.msra.mxu0 0.0
        %437 = vmatprep.subr.mxu0 0.0
        %438 = vmatpush2.msra.mxu0 0.0
        %439 = vmatprep.subr.mxu0 0.0
        %440 = vmatpush2.msra.mxu0 0.0
        %441 = vmatprep.subr.mxu0 0.0
        %442 = vmatpush2.msra.mxu0 0.0
        %443 = vmatprep.mubr.f32.mxu0 0.0
        %444 = vmatmul.mubr.f32.gmra.mxu0 %v368
        %v445 = vpop.f32.mrf.mxu0
        %v446 = vadd.f32 %v350, %v445
        %v447 = vpop.f32.mrf.mxu0
        %v448 = vadd.f32 %v350, %v447
        %449 = vmatprep.mubr.f32.mxu0 0.0
        %450 = vmatmul.mubr.f32.gmra.mxu0 %v371
        %v451 = vpop.f32.mrf.mxu0
        %v452 = vadd.f32 %v355, %v451
        %v453 = vpop.f32.mrf.mxu0
        %v454 = vadd.f32 %v355, %v453
        %455 = vmatprep.mubr.f32.mxu0 0.0
        %456 = vmatmul.mubr.f32.gmra.mxu0 %v374
        %v457 = vpop.f32.mrf.mxu0
        %v458 = vadd.f32 %v360, %v457
        %v459 = vpop.f32.mrf.mxu0
        %v460 = vadd.f32 %v360, %v459
        %461 = vmatprep.mubr.f32.mxu0 0.0
        %462 = vmatmul.mubr.f32.gmra.mxu0 %v377
        %v463 = vpop.f32.mrf.mxu0
        %v464 = vadd.f32 %v365, %v463
        %v465 = vpop.f32.mrf.mxu0
        %v466 = vadd.f32 %v365, %v465
        %467 = vdwg.mxu0
        %v468 = vtanh.pop %v446
        %v469 = vtanh.pop %v448
        %v470 = vtanh.pop %v452
        %v471 = vtanh.pop %v454
        %v472 = vtanh.pop %v458
        %v473 = vtanh.pop %v460
        %v474 = vtanh.pop %v464
        %v475 = vtanh.pop %v466
        %s476 = scalar_lea.vmem %s1, 64
        %v477 = vld [vmem:[%s476] sm:$0xff]
        %v478 = vld [vmem:[%s476 + $0x8] sm:$0xff]
        %v479 = vld [vmem:[%s476 + $0x10] sm:$0xff]
        %v480 = vld [vmem:[%s476 + $0x18] sm:$0xff]
        %s481 = scalar_lea.vmem %s2, 64
        %v482 = vld [vmem:[%s481] sm:$0xff]
        %v483 = vld [vmem:[%s481 + $0x8] sm:$0xff]
        %v484 = vld [vmem:[%s481 + $0x10] sm:$0xff]
        %v485 = vld [vmem:[%s481 + $0x18] sm:$0xff]
        %487 = vset.pattern.permute.xlu0 0
        %488 = vperm.xlu0 %487, %v482
        %v489 = vpop.permute.xlu0 %488
        %492 = vset.pattern.permute.xlu0 0
        %493 = vperm.xlu0 %492, %v483
        %v494 = vpop.permute.xlu0 %493
        %496 = vset.pattern.permute.xlu0 0
        %497 = vperm.xlu0 %496, %v484
        %v498 = vpop.permute.xlu0 %497
        %500 = vset.pattern.permute.xlu0 0
        %501 = vperm.xlu0 %500, %v485
        %v502 = vpop.permute.xlu0 %501
        %v504 = vsel %vm227, %v477, 0
        %v507 = vsel %vm227, %v478, 0
        %v510 = vsel %vm227, %v479, 0
        %v513 = vsel %vm227, %v480, 0
        %515 = vmatprep.subr.mxu0 0.0
        %516 = vmatpush1.msra.mxu0 0.0
        %517 = vmatprep.subr.mxu0 0.0
        %518 = vmatpush1.msra.mxu0 0.0
        %519 = vmatprep.subr.mxu0 0.0
        %520 = vmatpush1.msra.mxu0 0.0
        %521 = vmatprep.subr.mxu0 0.0
        %522 = vmatpush1.msra.mxu0 0.0
        %523 = vmatprep.subr.mxu0 0.0
        %524 = vmatpush1.msra.mxu0 0.0
        %525 = vmatprep.subr.mxu0 0.0
        %526 = vmatpush1.msra.mxu0 0.0
        %527 = vmatprep.subr.mxu0 0.0
        %528 = vmatpush1.msra.mxu0 0.0
        %529 = vmatprep.subr.mxu0 0.0
        %530 = vmatpush1.msra.mxu0 0.0
        %531 = vmatprep.subr.mxu0 0.0
        %532 = vmatpush1.msra.mxu0 0.0
        %533 = vmatprep.subr.mxu0 0.0
        %534 = vmatpush1.msra.mxu0 0.0
        %535 = vmatprep.subr.mxu0 0.0
        %536 = vmatpush1.msra.mxu0 0.0
        %537 = vmatprep.subr.mxu0 0.0
        %538 = vmatpush1.msra.mxu0 0.0
        %539 = vmatprep.subr.mxu0 %v475
        %540 = vmatpush1.msra.mxu0 %v474
        %541 = vmatprep.subr.mxu0 %v473
        %542 = vmatpush1.msra.mxu0 %v472
        %543 = vmatprep.subr.mxu0 %v471
        %544 = vmatpush1.msra.mxu0 %v470
        %545 = vmatprep.subr.mxu0 %v469
        %546 = vmatpush1.msra.mxu0 %v468
        %547 = vmatprep.subr.mxu0 0.0
        %548 = vmatpush2.msra.mxu0 0.0
        %549 = vmatprep.subr.mxu0 0.0
        %550 = vmatpush2.msra.mxu0 0.0
        %551 = vmatprep.subr.mxu0 0.0
        %552 = vmatpush2.msra.mxu0 0.0
        %553 = vmatprep.subr.mxu0 0.0
        %554 = vmatpush2.msra.mxu0 0.0
        %555 = vmatprep.subr.mxu0 0.0
        %556 = vmatpush2.msra.mxu0 0.0
        %557 = vmatprep.subr.mxu0 0.0
        %558 = vmatpush2.msra.mxu0 0.0
        %559 = vmatprep.subr.mxu0 0.0
        %560 = vmatpush2.msra.mxu0 0.0
        %561 = vmatprep.subr.mxu0 0.0
        %562 = vmatpush2.msra.mxu0 0.0
        %563 = vmatprep.subr.mxu0 0.0
        %564 = vmatpush2.msra.mxu0 0.0
        %565 = vmatprep.subr.mxu0 0.0
        %566 = vmatpush2.msra.mxu0 0.0
        %567 = vmatprep.subr.mxu0 0.0
        %568 = vmatpush2.msra.mxu0 0.0
        %569 = vmatprep.subr.mxu0 0.0
        %570 = vmatpush2.msra.mxu0 0.0
        %571 = vmatprep.subr.mxu0 0.0
        %572 = vmatpush2.msra.mxu0 0.0
        %573 = vmatprep.subr.mxu0 0.0
        %574 = vmatpush2.msra.mxu0 0.0
        %575 = vmatprep.subr.mxu0 0.0
        %576 = vmatpush2.msra.mxu0 0.0
        %577 = vmatprep.subr.mxu0 0.0
        %578 = vmatpush2.msra.mxu0 0.0
        %579 = vmatprep.mubr.f32.mxu0 0.0
        %580 = vmatmul.mubr.f32.gmra.mxu0 %v504
        %v581 = vpop.f32.mrf.mxu0
        %v582 = vadd.f32 %v489, %v581
        %v583 = vpop.f32.mrf.mxu0
        %v584 = vadd.f32 %v489, %v583
        %585 = vmatprep.mubr.f32.mxu0 0.0
        %586 = vmatmul.mubr.f32.gmra.mxu0 %v507
        %v587 = vpop.f32.mrf.mxu0
        %v588 = vpop.f32.mrf.mxu0
        %589 = vmatprep.mubr.f32.mxu0 0.0
        %590 = vmatmul.mubr.f32.gmra.mxu0 %v510
        %v591 = vpop.f32.mrf.mxu0
        %v592 = vpop.f32.mrf.mxu0
        %593 = vmatprep.mubr.f32.mxu0 0.0
        %594 = vmatmul.mubr.f32.gmra.mxu0 %v513
        %v595 = vpop.f32.mrf.mxu0
        %v596 = vpop.f32.mrf.mxu0
        %597 = vdwg.mxu0
        %v600 = vcombine.low %v582, %v584
        %v602 = vunpack.c.l.s4 1966171168
        %v603 = vunpack.c.0.s8 %v602
        %v604 = vlaneseq
        %v605 = vshrl.u32 %v604, 7
        %v606 = vsub.s32 %v603, %v605
        %v607 = vrot.slane %v600, %v606
        %v609 = vunpack.c.l.s4 1966171168
        %v610 = vunpack.c.0.s8 %v609
        %v611 = vlaneseq
        %v612 = vshrl.u32 %v611, 7
        %v613 = vsub.s32 %v610, %v612
        %v614 = vrot.slane %v607, %v613
        %v616 = vlaneseq
        %vm617 = vcmp.ge.s32.totalorder %v616, 0
        %vm618 = vcmp.lt.s32.totalorder %v616, 256
        %vm619 = vmand %vm617, %vm618
        %620 = vst.msk [vmem:[%s188] sm:$0x3] %vm619, %v614
        %s621 = sand.u32 %s96, 1
        %s622 = scalar_lea.sflag [#allocation4], %s621
        %s623 = sand.u32 %s96, 1
        %s624 = smul.addr %s623, 2
        %s625 = scalar_lea.vmem [#allocation5], %s624
        // Predicated region
        $region37: #{tpu_custom_call.1} parent=31 // pred_check
          %p626 = pneg %p106
        $region38: #{tpu_custom_call.1} parent=31 // pred_check_branch
          %628 = sbr.rel (%p626) target = $region40
        $region39: #{tpu_custom_call.1} parent=31 // pred_region
          %s629 = smul.u32 2, %s20
          %s631 = ssub.s32 32, 32
          %632 = vsyncadd %s622, %s631
          %s633 = smul.addr %s629, 16
          %s634 = scalar_lea.hbm %s3, %s633
          %s636 = sshll.u32 %s625, 4
          %s637 = int_to_ptr.vmem [resolvable:$true] %s636
          %639 = dma.vmem_to_hbm [thread:$0]  %s637, 32, %s634, %s622
        $region40: #{tpu_custom_call.1} parent=31 // pred_fallthru
          _
      $region32: #{tpu_custom_call.1} parent=5 // pred_fallthru
        _
      %p640 = scmp.le.s32.totalorder 2, %s15
      // Predicated region
      $region41: #{tpu_custom_call.1} parent=5 // pred_check
        %p641 = pneg %p640
      $region42: #{tpu_custom_call.1} parent=5 // pred_check_branch
        %643 = sbr.rel (%p641) target = $region44
      $region43: #{tpu_custom_call.1} parent=5 // pred_region
        %s644 = ssub.s32 %s15, 2
        // Predicated region
        $region45: #{tpu_custom_call.1} parent=43 // pred_check
          %p645 = pneg %p112
        $region46: #{tpu_custom_call.1} parent=43 // pred_check_branch
          %647 = sbr.rel (%p645) target = $region48
        $region47: #{tpu_custom_call.1} parent=43 // pred_region
          %s648 = sand.u32 %s97, 1
          %s649 = scalar_lea.sflag [#allocation4], %s648
          %s650 = sand.u32 %s97, 1
          %s651 = smul.addr %s650, 2
          %s652 = scalar_lea.vmem [#allocation5], %s651
          %653 = dma.done %s649, 32
        $region48: #{tpu_custom_call.1} parent=43 // pred_fallthru
          _
      $region44: #{tpu_custom_call.1} parent=5 // pred_fallthru
        _
    $region6: #{tpu_custom_call.1} parent=1 // loop_footer
      %s19 = sadd.s32 1, %s15
    $region7: #{tpu_custom_call.1} parent=1 // loop_footer_branch
      %14 = sbr.rel target = $region3
    $region8: #{tpu_custom_call.1} parent=1 // loop_exit
      _
    %654 = vsyncpa [#allocation3], 1
    %s655 = scalar_lea.sflag [#allocation3], 1
    %656 = vsyncpa %s655, 1
    %657 = vsyncpa [#allocation4], 1
    %s658 = scalar_lea.sflag [#allocation4], 1
    %659 = vsyncpa %s658, 1

</llo_original>
